<compile_context>
chip_gen: v5e
topology: v5e:2x2
jax: 0.10.0
libtpu: 0.0.40
codegen_flags: <defaults>
</compile_context>

<pallas_src>
import jax
import jax.numpy as jnp
from jax.experimental import pallas as pl
from jax.experimental.pallas import tpu as pltpu


def pcgnn_kernel(pT_ref, cT_ref, eaT_ref, invdegT_ref, srcT_ref, tgt_ref,
                 wm0_ref, wm1_ref, wme_ref, bm_ref,
                 wux0_ref, wux1_ref, wuaT_ref, bu_ref,
                 out_ref):
    pT = pT_ref[...]                # (1, N)  x[:, 0]  (the only column that changes)
    cT = cT_ref[...]                # (1, N)  x[:, 1]  (static across layers)
    eaT = eaT_ref[...]              # (1, E)  edge_attr (static)
    invdegT = invdegT_ref[...]      # (1, N)  1 / max(in-degree, 1)

    # One-hot operators arrive as bf16 (0/1 exact); upcast once, keep all math in f32.
    srcT = srcT_ref[...].astype(jnp.float32)   # (N, E)  gather:  x_j^T = x^T @ srcT
    tgt = tgt_ref[...].astype(jnp.float32)     # (E, N)  scatter-sum: aggr^T = msg^T @ tgt

    wm0 = wm0_ref[...]              # (32, 1) fused mlp1 row for x_j[:, 0]
    wm1 = wm1_ref[...]              # (32, 1) fused mlp1 row for x_j[:, 1]
    wme = wme_ref[...]              # (32, 1) fused mlp1 row for edge_attr
    bm = bm_ref[...]                # (32, 1) fused mlp1 bias
    wux0 = wux0_ref[...]            # (1, 1)  fused mlp2 weight for x[:, 0]
    wux1 = wux1_ref[...]            # (1, 1)  fused mlp2 weight for x[:, 1]
    wuaT = wuaT_ref[...]            # (1, 32) fused mlp2 weights for aggr_out
    bu = bu_ref[...]                # (1, 1)  fused mlp2 bias

    # Static contributions (x[:,1] and edge_attr never change): computed once.
    c_jT = jnp.dot(cT, srcT, preferred_element_type=jnp.float32)        # (1, E) gather of col 1
    S = wm1 * c_jT + wme * eaT + bm                                      # (32, E) static mlp1 part
    U = wux1 * cT + bu                                                   # (1, N)  static mlp2 part

    # Three NNConv layers with shared weights (unrolled).
    for _ in range(3):
        # message: relu(fused_mlp1([x_j, edge_attr]))
        p_jT = jnp.dot(pT, srcT, preferred_element_type=jnp.float32)    # (1, E) gather col 0
        msgT = jnp.maximum(wm0 * p_jT + S, 0.0)                          # (32, E)
        # project to mlp2's aggr weights BEFORE the (linear) mean-scatter
        msg1T = jnp.dot(wuaT, msgT, preferred_element_type=jnp.float32)  # (1, E)
        aggrT = jnp.dot(msg1T, tgt, preferred_element_type=jnp.float32) * invdegT  # (1, N)
        # update: sigmoid(fused_mlp2([x, aggr]));  new col 0, col 1 unchanged
        pT = jax.nn.sigmoid(wux0 * pT + aggrT + U)                       # (1, N)

    out_ref[0:1, :] = pT
    out_ref[1:2, :] = cT


def init_params(key):
    ks = jax.random.split(key, 12)
    s = 0.1
    p = {
        "W1a": s * jax.random.normal(ks[0], (3, 32), jnp.float32),
        "b1a": s * jax.random.normal(ks[1], (32,), jnp.float32),
        "W1b": s * jax.random.normal(ks[2], (32, 32), jnp.float32),
        "b1b": s * jax.random.normal(ks[3], (32,), jnp.float32),
        "W1c": s * jax.random.normal(ks[4], (32, 32), jnp.float32),
        "b1c": s * jax.random.normal(ks[5], (32,), jnp.float32),
        "W2a": s * jax.random.normal(ks[6], (34, 32), jnp.float32),
        "b2a": s * jax.random.normal(ks[7], (32,), jnp.float32),
        "W2b": s * jax.random.normal(ks[8], (32, 16), jnp.float32),
        "b2b": s * jax.random.normal(ks[9], (16,), jnp.float32),
        "W2c": s * jax.random.normal(ks[10], (16, 1), jnp.float32),
        "b2c": s * jax.random.normal(ks[11], (1,), jnp.float32),
    }
    return p


def fuse_params(p):
    """Fuse the purely-affine mlp1 / mlp2 stacks at trace time (exact up to f32 rounding)."""
    with jax.default_matmul_precision("highest"):
        Wm = p["W1a"] @ p["W1b"] @ p["W1c"]                          # (3, 32)
        bm = (p["b1a"] @ p["W1b"] + p["b1b"]) @ p["W1c"] + p["b1c"]  # (32,)
        Wu = p["W2a"] @ p["W2b"] @ p["W2c"]                          # (34, 1)
        bu = (p["b2a"] @ p["W2b"] + p["b2b"]) @ p["W2c"] + p["b2c"]  # (1,)
    return Wm, bm, Wu, bu


def pcgnn_forward(x, edge_index, edge_attr, p):
    N = x.shape[0]
    E = edge_attr.shape[0]
    src_idx, tgt_idx = edge_index[0], edge_index[1]

    Wm, bm, Wu, bu = fuse_params(p)

    # Glue: dense one-hot gather / scatter operators (exact in bf16 since values are 0/1).
    # Out-of-range indices are zeroed by one_hot, matching segment_sum's drop behavior.
    # TODO(synk): for non-toy graphs, replace the dense O(E*N) one-hot gather/scatter with a
    # PrefetchScalarGridSpec index-based gather + edge-tiled grid (and halve the edge tile on
    # v7x's 64 MiB VMEM), instead of whole-array VMEM residency.
    src_oh_T = jax.nn.one_hot(src_idx, N, dtype=jnp.float32).T.astype(jnp.bfloat16)  # (N, E)
    tgt_oh_f32 = jax.nn.one_hot(tgt_idx, N, dtype=jnp.float32)                       # (E, N)
    deg = jnp.sum(tgt_oh_f32, axis=0)                                                # (N,)
    inv_degT = (1.0 / jnp.maximum(deg, 1.0)).reshape(1, N)                           # (1, N), f32
    tgt_oh = tgt_oh_f32.astype(jnp.bfloat16)                                         # (E, N)

    # Lane-dense transposed layout: node/edge axis on the lane dimension.
    pT = x[:, 0:1].T          # (1, N)
    cT = x[:, 1:2].T          # (1, N)
    eaT = edge_attr.T         # (1, E)

    args = (
        pT, cT, eaT, inv_degT, src_oh_T, tgt_oh,
        Wm[0:1].T, Wm[1:2].T, Wm[2:3].T, bm.reshape(32, 1),
        Wu[0:1, :], Wu[1:2, :], Wu[2:34, :].T, bu.reshape(1, 1),
    )

    vmem = pl.BlockSpec(memory_space=pltpu.MemorySpace.VMEM)
    outT = pl.pallas_call(
        pcgnn_kernel,
        out_shape=jax.ShapeDtypeStruct((2, N), jnp.float32),
        in_specs=[vmem] * len(args),
        out_specs=vmem,
    )(*args)
    return outT.T  # (N, 2)


def reference_forward(x, edge_index, edge_attr, p):
    """Pure-JAX reference matching the PyTorch/PyG semantics."""
    N = x.shape[0]
    E = edge_attr.shape[0]
    src_idx, tgt_idx = edge_index[0], edge_index[1]

    def conv(x):
        x_j = x[src_idx]                                          # (E, 2)
        tmp = jnp.concatenate([x_j, edge_attr], axis=1)           # (E, 3)
        h = tmp @ p["W1a"] + p["b1a"]
        h = h @ p["W1b"] + p["b1b"]
        h = h @ p["W1c"] + p["b1c"]
        msg = jax.nn.relu(h)                                      # (E, 32)
        summed = jax.ops.segment_sum(msg, tgt_idx, num_segments=N)
        cnt = jax.ops.segment_sum(jnp.ones((E,), jnp.float32), tgt_idx, num_segments=N)
        aggr = summed / jnp.maximum(cnt, 1.0)[:, None]            # (N, 32)
        t = jnp.concatenate([x, aggr], axis=1)                    # (N, 34)
        t = t @ p["W2a"] + p["b2a"]
        t = t @ p["W2b"] + p["b2b"]
        t = t @ p["W2c"] + p["b2c"]
        comb = jax.nn.sigmoid(t)                                  # (N, 1)
        return jnp.concatenate([comb, x[:, 1:3]], axis=1)         # (N, 2)

    for _ in range(3):
        x = conv(x)
    return x


if __name__ == "__main__":
    key = jax.random.PRNGKey(0)
    k_x, k_ei, k_ea, k_p = jax.random.split(key, 4)

    N, E = 8, 16
    x0 = jax.random.normal(k_x, (N, 2), dtype=jnp.float32)
    edge_index = jax.random.randint(k_ei, (2, E), 0, N, dtype=jnp.int32)
    edge_attr = jax.random.normal(k_ea, (E, 1), dtype=jnp.float32)
    params = init_params(k_p)

    out = pcgnn_forward(x0, edge_index, edge_attr, params)
    out = jax.block_until_ready(out)

    ref = reference_forward(x0, edge_index, edge_attr, params)
    assert out.shape == (N, 2)
    assert jnp.allclose(out, ref, atol=1e-5, rtol=1e-5), (out, ref)

    print("KERNEL_OK")
</pallas_src>

<mosaic_0001>
module attributes {stable_mosaic.version = 11 : i64} {
  func.func @pcgnn_kernel(%arg0: memref<1x8xf32, #tpu.memory_space<vmem>>, %arg1: memref<1x8xf32, #tpu.memory_space<vmem>>, %arg2: memref<1x16xf32, #tpu.memory_space<vmem>>, %arg3: memref<1x8xf32, #tpu.memory_space<vmem>>, %arg4: memref<8x16xbf16, #tpu.memory_space<vmem>>, %arg5: memref<16x8xbf16, #tpu.memory_space<vmem>>, %arg6: memref<32x1xf32, #tpu.memory_space<vmem>>, %arg7: memref<32x1xf32, #tpu.memory_space<vmem>>, %arg8: memref<32x1xf32, #tpu.memory_space<vmem>>, %arg9: memref<32x1xf32, #tpu.memory_space<vmem>>, %arg10: memref<1x1xf32, #tpu.memory_space<vmem>>, %arg11: memref<1x1xf32, #tpu.memory_space<vmem>>, %arg12: memref<1x32xf32, #tpu.memory_space<vmem>>, %arg13: memref<1x1xf32, #tpu.memory_space<vmem>>, %arg14: memref<2x8xf32, #tpu.memory_space<vmem>>) attributes {dimension_semantics = [], scalar_prefetch = 0 : i64, scratch_operands = 0 : i64, tpu.core_type = #tpu.core_type<tc>} {
    %c0 = arith.constant 0 : index
    %c0_0 = arith.constant 0 : index
    %0 = vector.load %arg0[%c0, %c0_0] : memref<1x8xf32, #tpu.memory_space<vmem>>, vector<1x8xf32>
    %c0_1 = arith.constant 0 : index
    %c0_2 = arith.constant 0 : index
    %1 = vector.load %arg1[%c0_1, %c0_2] : memref<1x8xf32, #tpu.memory_space<vmem>>, vector<1x8xf32>
    %c0_3 = arith.constant 0 : index
    %c0_4 = arith.constant 0 : index
    %2 = vector.load %arg2[%c0_3, %c0_4] : memref<1x16xf32, #tpu.memory_space<vmem>>, vector<1x16xf32>
    %c0_5 = arith.constant 0 : index
    %c0_6 = arith.constant 0 : index
    %3 = vector.load %arg3[%c0_5, %c0_6] : memref<1x8xf32, #tpu.memory_space<vmem>>, vector<1x8xf32>
    %c0_7 = arith.constant 0 : index
    %c0_8 = arith.constant 0 : index
    %4 = vector.load %arg4[%c0_7, %c0_8] : memref<8x16xbf16, #tpu.memory_space<vmem>>, vector<8x16xbf16>
    %5 = arith.extf %4 : vector<8x16xbf16> to vector<8x16xf32>
    %c0_9 = arith.constant 0 : index
    %c0_10 = arith.constant 0 : index
    %6 = vector.load %arg5[%c0_9, %c0_10] : memref<16x8xbf16, #tpu.memory_space<vmem>>, vector<16x8xbf16>
    %7 = arith.extf %6 : vector<16x8xbf16> to vector<16x8xf32>
    %c0_11 = arith.constant 0 : index
    %c0_12 = arith.constant 0 : index
    %8 = vector.load %arg6[%c0_11, %c0_12] : memref<32x1xf32, #tpu.memory_space<vmem>>, vector<32x1xf32>
    %c0_13 = arith.constant 0 : index
    %c0_14 = arith.constant 0 : index
    %9 = vector.load %arg7[%c0_13, %c0_14] : memref<32x1xf32, #tpu.memory_space<vmem>>, vector<32x1xf32>
    %c0_15 = arith.constant 0 : index
    %c0_16 = arith.constant 0 : index
    %10 = vector.load %arg8[%c0_15, %c0_16] : memref<32x1xf32, #tpu.memory_space<vmem>>, vector<32x1xf32>
    %c0_17 = arith.constant 0 : index
    %c0_18 = arith.constant 0 : index
    %11 = vector.load %arg9[%c0_17, %c0_18] : memref<32x1xf32, #tpu.memory_space<vmem>>, vector<32x1xf32>
    %c0_19 = arith.constant 0 : index
    %c0_20 = arith.constant 0 : index
    %12 = vector.load %arg10[%c0_19, %c0_20] : memref<1x1xf32, #tpu.memory_space<vmem>>, vector<1x1xf32>
    %c0_21 = arith.constant 0 : index
    %c0_22 = arith.constant 0 : index
    %13 = vector.load %arg11[%c0_21, %c0_22] : memref<1x1xf32, #tpu.memory_space<vmem>>, vector<1x1xf32>
    %c0_23 = arith.constant 0 : index
    %c0_24 = arith.constant 0 : index
    %14 = vector.load %arg12[%c0_23, %c0_24] : memref<1x32xf32, #tpu.memory_space<vmem>>, vector<1x32xf32>
    %c0_25 = arith.constant 0 : index
    %c0_26 = arith.constant 0 : index
    %15 = vector.load %arg13[%c0_25, %c0_26] : memref<1x1xf32, #tpu.memory_space<vmem>>, vector<1x1xf32>
    %cst = arith.constant dense<0.000000e+00> : vector<1x16xf32>
    %16 = tpu.matmul %1, %5, %cst {dimension_numbers = #tpu.dot_dimension_numbers<[1], [0], [0], [1], [0, 0, 1, 1], [], []>} : vector<1x8xf32>, vector<8x16xf32>, vector<1x16xf32> -> vector<1x16xf32>
    %17 = vector.broadcast %9 : vector<32x1xf32> to vector<32x16xf32>
    %18 = vector.broadcast %16 : vector<1x16xf32> to vector<32x16xf32>
    %19 = arith.mulf %17, %18 : vector<32x16xf32>
    %20 = vector.broadcast %10 : vector<32x1xf32> to vector<32x16xf32>
    %21 = vector.broadcast %2 : vector<1x16xf32> to vector<32x16xf32>
    %22 = arith.mulf %20, %21 : vector<32x16xf32>
    %23 = arith.addf %19, %22 : vector<32x16xf32>
    %24 = vector.broadcast %11 : vector<32x1xf32> to vector<32x16xf32>
    %25 = arith.addf %23, %24 : vector<32x16xf32>
    %26 = vector.broadcast %13 : vector<1x1xf32> to vector<1x8xf32>
    %27 = arith.mulf %26, %1 : vector<1x8xf32>
    %28 = vector.broadcast %15 : vector<1x1xf32> to vector<1x8xf32>
    %29 = arith.addf %27, %28 : vector<1x8xf32>
    %cst_27 = arith.constant dense<0.000000e+00> : vector<1x16xf32>
    %30 = tpu.matmul %0, %5, %cst_27 {dimension_numbers = #tpu.dot_dimension_numbers<[1], [0], [0], [1], [0, 0, 1, 1], [], []>} : vector<1x8xf32>, vector<8x16xf32>, vector<1x16xf32> -> vector<1x16xf32>
    %31 = vector.broadcast %8 : vector<32x1xf32> to vector<32x16xf32>
    %32 = vector.broadcast %30 : vector<1x16xf32> to vector<32x16xf32>
    %33 = arith.mulf %31, %32 : vector<32x16xf32>
    %34 = arith.addf %33, %25 : vector<32x16xf32>
    %cst_28 = arith.constant 0.000000e+00 : f32
    %35 = vector.broadcast %cst_28 : f32 to vector<32x16xf32>
    %36 = arith.maximumf %34, %35 : vector<32x16xf32>
    %cst_29 = arith.constant dense<0.000000e+00> : vector<1x16xf32>
    %37 = tpu.matmul %14, %36, %cst_29 {dimension_numbers = #tpu.dot_dimension_numbers<[1], [0], [0], [1], [0, 0, 1, 1], [], []>} : vector<1x32xf32>, vector<32x16xf32>, vector<1x16xf32> -> vector<1x16xf32>
    %cst_30 = arith.constant dense<0.000000e+00> : vector<1x8xf32>
    %38 = tpu.matmul %37, %7, %cst_30 {dimension_numbers = #tpu.dot_dimension_numbers<[1], [0], [0], [1], [0, 0, 1, 1], [], []>} : vector<1x16xf32>, vector<16x8xf32>, vector<1x8xf32> -> vector<1x8xf32>
    %39 = arith.mulf %38, %3 : vector<1x8xf32>
    %40 = vector.broadcast %12 : vector<1x1xf32> to vector<1x8xf32>
    %41 = arith.mulf %40, %0 : vector<1x8xf32>
    %42 = arith.addf %41, %39 : vector<1x8xf32>
    %43 = arith.addf %42, %29 : vector<1x8xf32>
    %44 = arith.negf %43 : vector<1x8xf32>
    %45 = math.exp %44 : vector<1x8xf32>
    %cst_31 = arith.constant 1.000000e+00 : f32
    %46 = vector.broadcast %cst_31 : f32 to vector<1x8xf32>
    %47 = arith.addf %46, %45 : vector<1x8xf32>
    %48 = arith.divf %46, %47 : vector<1x8xf32>
    %cst_32 = arith.constant dense<0.000000e+00> : vector<1x16xf32>
    %49 = tpu.matmul %48, %5, %cst_32 {dimension_numbers = #tpu.dot_dimension_numbers<[1], [0], [0], [1], [0, 0, 1, 1], [], []>} : vector<1x8xf32>, vector<8x16xf32>, vector<1x16xf32> -> vector<1x16xf32>
    %50 = vector.broadcast %8 : vector<32x1xf32> to vector<32x16xf32>
    %51 = vector.broadcast %49 : vector<1x16xf32> to vector<32x16xf32>
    %52 = arith.mulf %50, %51 : vector<32x16xf32>
    %53 = arith.addf %52, %25 : vector<32x16xf32>
    %cst_33 = arith.constant 0.000000e+00 : f32
    %54 = vector.broadcast %cst_33 : f32 to vector<32x16xf32>
    %55 = arith.maximumf %53, %54 : vector<32x16xf32>
    %cst_34 = arith.constant dense<0.000000e+00> : vector<1x16xf32>
    %56 = tpu.matmul %14, %55, %cst_34 {dimension_numbers = #tpu.dot_dimension_numbers<[1], [0], [0], [1], [0, 0, 1, 1], [], []>} : vector<1x32xf32>, vector<32x16xf32>, vector<1x16xf32> -> vector<1x16xf32>
    %cst_35 = arith.constant dense<0.000000e+00> : vector<1x8xf32>
    %57 = tpu.matmul %56, %7, %cst_35 {dimension_numbers = #tpu.dot_dimension_numbers<[1], [0], [0], [1], [0, 0, 1, 1], [], []>} : vector<1x16xf32>, vector<16x8xf32>, vector<1x8xf32> -> vector<1x8xf32>
    %58 = arith.mulf %57, %3 : vector<1x8xf32>
    %59 = vector.broadcast %12 : vector<1x1xf32> to vector<1x8xf32>
    %60 = arith.mulf %59, %48 : vector<1x8xf32>
    %61 = arith.addf %60, %58 : vector<1x8xf32>
    %62 = arith.addf %61, %29 : vector<1x8xf32>
    %63 = arith.negf %62 : vector<1x8xf32>
    %64 = math.exp %63 : vector<1x8xf32>
    %cst_36 = arith.constant 1.000000e+00 : f32
    %65 = vector.broadcast %cst_36 : f32 to vector<1x8xf32>
    %66 = arith.addf %65, %64 : vector<1x8xf32>
    %67 = arith.divf %65, %66 : vector<1x8xf32>
    %cst_37 = arith.constant dense<0.000000e+00> : vector<1x16xf32>
    %68 = tpu.matmul %67, %5, %cst_37 {dimension_numbers = #tpu.dot_dimension_numbers<[1], [0], [0], [1], [0, 0, 1, 1], [], []>} : vector<1x8xf32>, vector<8x16xf32>, vector<1x16xf32> -> vector<1x16xf32>
    %69 = vector.broadcast %8 : vector<32x1xf32> to vector<32x16xf32>
    %70 = vector.broadcast %68 : vector<1x16xf32> to vector<32x16xf32>
    %71 = arith.mulf %69, %70 : vector<32x16xf32>
    %72 = arith.addf %71, %25 : vector<32x16xf32>
    %cst_38 = arith.constant 0.000000e+00 : f32
    %73 = vector.broadcast %cst_38 : f32 to vector<32x16xf32>
    %74 = arith.maximumf %72, %73 : vector<32x16xf32>
    %cst_39 = arith.constant dense<0.000000e+00> : vector<1x16xf32>
    %75 = tpu.matmul %14, %74, %cst_39 {dimension_numbers = #tpu.dot_dimension_numbers<[1], [0], [0], [1], [0, 0, 1, 1], [], []>} : vector<1x32xf32>, vector<32x16xf32>, vector<1x16xf32> -> vector<1x16xf32>
    %cst_40 = arith.constant dense<0.000000e+00> : vector<1x8xf32>
    %76 = tpu.matmul %75, %7, %cst_40 {dimension_numbers = #tpu.dot_dimension_numbers<[1], [0], [0], [1], [0, 0, 1, 1], [], []>} : vector<1x16xf32>, vector<16x8xf32>, vector<1x8xf32> -> vector<1x8xf32>
    %77 = arith.mulf %76, %3 : vector<1x8xf32>
    %78 = vector.broadcast %12 : vector<1x1xf32> to vector<1x8xf32>
    %79 = arith.mulf %78, %67 : vector<1x8xf32>
    %80 = arith.addf %79, %77 : vector<1x8xf32>
    %81 = arith.addf %80, %29 : vector<1x8xf32>
    %82 = arith.negf %81 : vector<1x8xf32>
    %83 = math.exp %82 : vector<1x8xf32>
    %cst_41 = arith.constant 1.000000e+00 : f32
    %84 = vector.broadcast %cst_41 : f32 to vector<1x8xf32>
    %85 = arith.addf %84, %83 : vector<1x8xf32>
    %86 = arith.divf %84, %85 : vector<1x8xf32>
    %c0_42 = arith.constant 0 : index
    %c0_43 = arith.constant 0 : index
    %87 = vector.load %arg14[%c0_42, %c0_43] : memref<2x8xf32, #tpu.memory_space<vmem>>, vector<1x8xf32>
    tpu.vector_store %arg14[%c0_42, %c0_43], %86 {strides = array<i32>} : memref<2x8xf32, #tpu.memory_space<vmem>>, vector<1x8xf32>,
    %c1 = arith.constant 1 : index
    %c0_44 = arith.constant 0 : index
    %88 = vector.load %arg14[%c1, %c0_44] : memref<2x8xf32, #tpu.memory_space<vmem>>, vector<1x8xf32>
    tpu.vector_store %arg14[%c1, %c0_44], %1 {strides = array<i32>} : memref<2x8xf32, #tpu.memory_space<vmem>>, vector<1x8xf32>,
    return
  }
}

</mosaic_0001>

<llo_original>
// kernel: tpu_custom_call.1
$region0: #{tpu_custom_call.1}
  #allocation0 [shape = 'u32[]', space=smem, size = 0x4, offset = 0x4, fixed_abs, tag = 'smem constant byte address 0x4 - core index']
  #allocation1 [shape = 'u32[72,128]{1,0:T(1,128)}', space=vmem, size = 0x9000, scoped, tag = 'internal scratch']
  #allocation2 [shape = 'f32[1,1]{1,0:T(1,128)S(1)}', space=vmem, size = 0x200, scoped, tag = 'scoped memory for tpu_custom_call.1']
  #allocation3 [shape = 'f32[1,1]{1,0:T(1,128)S(1)}', space=vmem, size = 0x200, scoped, tag = 'scoped memory for tpu_custom_call.1']
  #allocation4 [shape = 'f32[1,1]{1,0:T(1,128)S(1)}', space=vmem, size = 0x200, scoped, tag = 'scoped memory for tpu_custom_call.1']
  %s0 = inlined_call_operand.vmem [shape: f32[1,8], index: 0, kind: input, shape index: {}]
  %s1 = inlined_call_operand.vmem [shape: f32[1,8], index: 1, kind: input, shape index: {}]
  %s2 = inlined_call_operand.vmem [shape: f32[1,16], index: 2, kind: input, shape index: {}]
  %s3 = inlined_call_operand.vmem [shape: f32[1,8], index: 3, kind: input, shape index: {}]
  %s4 = inlined_call_operand.vmem [shape: bf16[8,16], index: 4, kind: input, shape index: {}]
  %s5 = inlined_call_operand.vmem [shape: bf16[16,8], index: 5, kind: input, shape index: {}]
  %s6 = inlined_call_operand.vmem [shape: f32[32,1], index: 6, kind: input, shape index: {}]
  %s7 = inlined_call_operand.vmem [shape: f32[32,1], index: 7, kind: input, shape index: {}]
  %s8 = inlined_call_operand.vmem [shape: f32[32,1], index: 8, kind: input, shape index: {}]
  %s9 = inlined_call_operand.vmem [shape: f32[32,1], index: 9, kind: input, shape index: {}]
  %s10 = inlined_call_operand.<no memory space> [shape: f32[1,1], index: 10, kind: input, shape index: {}]
  %s11 = inlined_call_operand.<no memory space> [shape: f32[1,1], index: 11, kind: input, shape index: {}]
  %s12 = inlined_call_operand.vmem [shape: f32[1,32], index: 12, kind: input, shape index: {}]
  %s13 = inlined_call_operand.<no memory space> [shape: f32[1,1], index: 13, kind: input, shape index: {}]
  %s14 = inlined_call_operand.hbm [shape: f32[2,8], index: 14, kind: output, shape index: {}]
  %s15 = sld [smem:[#allocation0]]
  $region66: #{tpu_custom_call.1} parent=0
    _
  %s17 = ssub.s32 1, %s15
  %s18 = scalar_select 0, %s17, %s15
  %v19 = vstv %s10
  %20 = vst [vmem:[#allocation2] sm:$0x1] %v19
  %v21 = vstv %s11
  %22 = vst [vmem:[#allocation3] sm:$0x1] %v21
  %v23 = vstv %s13
  %24 = vst [vmem:[#allocation4] sm:$0x1] %v23
  $region1: #{tpu_custom_call.1} parent=0
    #allocation5 [shape = 'u8[1024]{0}', space=vmem, size = 0x400, scoped, tag = 'output window, operand 0, single buffered']
    #allocation6 [shape = 's32[1]{0}', space=sflag, size = 0x4, scoped, tag = 'scoped memory for tpu_custom_call.1']
    %25 = vsyncpa [#allocation6], 0
    // Predicated region
    $region2: #{tpu_custom_call.1} parent=1 // pred_check
      _
    $region3: #{tpu_custom_call.1} parent=1 // pred_check_branch
      %27 = sbr.rel (0) target = $region5
    $region4: #{tpu_custom_call.1} parent=1 // pred_region
      _
    $region5: #{tpu_custom_call.1} parent=1 // pred_fallthru
      _
    // Predicated region
    $region6: #{tpu_custom_call.1} parent=1 // pred_check
      _
    $region7: #{tpu_custom_call.1} parent=1 // pred_check_branch
      %29 = sbr.rel (0) target = $region9
    $region8: #{tpu_custom_call.1} parent=1 // pred_region
      _
    $region9: #{tpu_custom_call.1} parent=1 // pred_fallthru
      _
    // Predicated region
    $region10: #{tpu_custom_call.1} parent=1 // pred_check
      _
    $region11: #{tpu_custom_call.1} parent=1 // pred_check_branch
      %31 = sbr.rel (0) target = $region13
    $region12: #{tpu_custom_call.1} parent=1 // pred_region
      _
    $region13: #{tpu_custom_call.1} parent=1 // pred_fallthru
      _
    // Predicated region
    $region14: #{tpu_custom_call.1} parent=1 // pred_check
      _
    $region15: #{tpu_custom_call.1} parent=1 // pred_check_branch
      %33 = sbr.rel (0) target = $region17
    $region16: #{tpu_custom_call.1} parent=1 // pred_region
      _
    $region17: #{tpu_custom_call.1} parent=1 // pred_fallthru
      _
    // Predicated region
    $region18: #{tpu_custom_call.1} parent=1 // pred_check
      _
    $region19: #{tpu_custom_call.1} parent=1 // pred_check_branch
      %35 = sbr.rel (0) target = $region21
    $region20: #{tpu_custom_call.1} parent=1 // pred_region
      _
    $region21: #{tpu_custom_call.1} parent=1 // pred_fallthru
      _
    // Predicated region
    $region22: #{tpu_custom_call.1} parent=1 // pred_check
      _
    $region23: #{tpu_custom_call.1} parent=1 // pred_check_branch
      %37 = sbr.rel (0) target = $region25
    $region24: #{tpu_custom_call.1} parent=1 // pred_region
      _
    $region25: #{tpu_custom_call.1} parent=1 // pred_fallthru
      _
    // Predicated region
    $region26: #{tpu_custom_call.1} parent=1 // pred_check
      _
    $region27: #{tpu_custom_call.1} parent=1 // pred_check_branch
      %39 = sbr.rel (0) target = $region29
    $region28: #{tpu_custom_call.1} parent=1 // pred_region
      _
    $region29: #{tpu_custom_call.1} parent=1 // pred_fallthru
      _
    // Predicated region
    $region30: #{tpu_custom_call.1} parent=1 // pred_check
      _
    $region31: #{tpu_custom_call.1} parent=1 // pred_check_branch
      %41 = sbr.rel (0) target = $region33
    $region32: #{tpu_custom_call.1} parent=1 // pred_region
      _
    $region33: #{tpu_custom_call.1} parent=1 // pred_fallthru
      _
    // Predicated region
    $region34: #{tpu_custom_call.1} parent=1 // pred_check
      _
    $region35: #{tpu_custom_call.1} parent=1 // pred_check_branch
      %43 = sbr.rel (0) target = $region37
    $region36: #{tpu_custom_call.1} parent=1 // pred_region
      _
    $region37: #{tpu_custom_call.1} parent=1 // pred_fallthru
      _
    // Predicated region
    $region38: #{tpu_custom_call.1} parent=1 // pred_check
      _
    $region39: #{tpu_custom_call.1} parent=1 // pred_check_branch
      %45 = sbr.rel (0) target = $region41
    $region40: #{tpu_custom_call.1} parent=1 // pred_region
      _
    $region41: #{tpu_custom_call.1} parent=1 // pred_fallthru
      _
    // Predicated region
    $region42: #{tpu_custom_call.1} parent=1 // pred_check
      _
    $region43: #{tpu_custom_call.1} parent=1 // pred_check_branch
      %47 = sbr.rel (0) target = $region45
    $region44: #{tpu_custom_call.1} parent=1 // pred_region
      _
    $region45: #{tpu_custom_call.1} parent=1 // pred_fallthru
      _
    // Predicated region
    $region46: #{tpu_custom_call.1} parent=1 // pred_check
      _
    $region47: #{tpu_custom_call.1} parent=1 // pred_check_branch
      %49 = sbr.rel (0) target = $region49
    $region48: #{tpu_custom_call.1} parent=1 // pred_region
      _
    $region49: #{tpu_custom_call.1} parent=1 // pred_fallthru
      _
    // Predicated region
    $region50: #{tpu_custom_call.1} parent=1 // pred_check
      _
    $region51: #{tpu_custom_call.1} parent=1 // pred_check_branch
      %51 = sbr.rel (0) target = $region53
    $region52: #{tpu_custom_call.1} parent=1 // pred_region
      _
    $region53: #{tpu_custom_call.1} parent=1 // pred_fallthru
      _
    // Predicated region
    $region54: #{tpu_custom_call.1} parent=1 // pred_check
      _
    $region55: #{tpu_custom_call.1} parent=1 // pred_check_branch
      %53 = sbr.rel (0) target = $region57
    $region56: #{tpu_custom_call.1} parent=1 // pred_region
      _
    $region57: #{tpu_custom_call.1} parent=1 // pred_fallthru
      _
    %v54 = vld [vmem:[%s0] sm:$0x1]
    %v55 = vld [vmem:[%s1] sm:$0x1]
    %v56 = vld [vmem:[%s2] sm:$0x1]
    %v57 = vld [vmem:[%s3] sm:$0x1]
    %v58 = vld [vmem:[%s4] sm:$0xf]
    %v59 = vunpack.c.l.bf16 %v58
    %v60 = vld [vmem:[%s5] sm:$0xf]
    %v61 = vld [vmem:[%s5 + $0x4] sm:$0xf]
    %v62 = vunpack.c.l.bf16 %v60
    %v63 = vunpack.c.l.bf16 %v61
    %v64 = vld [vmem:[%s6] sm:$0xff]
    %v65 = vld [vmem:[%s6 + $0x8] sm:$0xff]
    %v66 = vld [vmem:[%s6 + $0x10] sm:$0xff]
    %v67 = vld [vmem:[%s6 + $0x18] sm:$0xff]
    %v68 = vld [vmem:[%s7] sm:$0xff]
    %v69 = vld [vmem:[%s7 + $0x8] sm:$0xff]
    %v70 = vld [vmem:[%s7 + $0x10] sm:$0xff]
    %v71 = vld [vmem:[%s7 + $0x18] sm:$0xff]
    %v72 = vld [vmem:[%s8] sm:$0xff]
    %v73 = vld [vmem:[%s8 + $0x8] sm:$0xff]
    %v74 = vld [vmem:[%s8 + $0x10] sm:$0xff]
    %v75 = vld [vmem:[%s8 + $0x18] sm:$0xff]
    %v76 = vld [vmem:[%s9] sm:$0xff]
    %v77 = vld [vmem:[%s9 + $0x8] sm:$0xff]
    %v78 = vld [vmem:[%s9 + $0x10] sm:$0xff]
    %v79 = vld [vmem:[%s9 + $0x18] sm:$0xff]
    %v80 = vld [vmem:[#allocation2] sm:$0x1]
    %v81 = vld [vmem:[#allocation3] sm:$0x1]
    %v82 = vld [vmem:[%s12] sm:$0x1]
    %v83 = vld [vmem:[#allocation4] sm:$0x1]
    %vm84 = vcmask 64512
    %v86 = vsel %vm84, %v55, 0
    %88 = vmatpush.msra.mxu0 0.0
    %89 = vmatpush.msra.mxu0 0.0
    %90 = vmatpush.msra.mxu0 0.0
    %91 = vmatpush.msra.mxu0 0.0
    %92 = vmatpush.msra.mxu0 0.0
    %93 = vmatpush.msra.mxu0 0.0
    %94 = vmatpush.msra.mxu0 0.0
    %95 = vmatpush.msra.mxu0 0.0
    %96 = vmatpush.msra.mxu0 0.0
    %97 = vmatpush.msra.mxu0 0.0
    %98 = vmatpush.msra.mxu0 0.0
    %99 = vmatpush.msra.mxu0 0.0
    %100 = vmatpush.msra.mxu0 0.0
    %101 = vmatpush.msra.mxu0 0.0
    %102 = vmatpush.msra.mxu0 0.0
    %103 = vmatpush.msra.mxu0 %v59
    %104 = vmatmul.f32.gmra.mxu0 %v86
    %v105 = vpop.f32.mrf.mxu0
    %v106 = vadd.f32 0.0, %v105
    %107 = vdwg.mxu0
    %109 = vset.pattern.permute.xlu0 0
    %110 = vperm.xlu0 %109, %v68
    %v111 = vpop.permute.xlu0 %110
    %114 = vset.pattern.permute.xlu0 0
    %115 = vperm.xlu0 %114, %v69
    %v116 = vpop.permute.xlu0 %115
    %119 = vset.pattern.permute.xlu0 0
    %120 = vperm.xlu0 %119, %v70
    %v121 = vpop.permute.xlu0 %120
    %124 = vset.pattern.permute.xlu0 0
    %125 = vperm.xlu0 %124, %v71
    %v126 = vpop.permute.xlu0 %125
    %v128 = vperm.slane %v106, 0
    %v129 = vmul.f32 %v111, %v128
    %v130 = vmul.f32 %v116, %v128
    %v131 = vmul.f32 %v121, %v128
    %v132 = vmul.f32 %v126, %v128
    %134 = vset.pattern.permute.xlu0 0
    %135 = vperm.xlu0 %134, %v72
    %v136 = vpop.permute.xlu0 %135
    %139 = vset.pattern.permute.xlu0 0
    %140 = vperm.xlu0 %139, %v73
    %v141 = vpop.permute.xlu0 %140
    %144 = vset.pattern.permute.xlu0 0
    %145 = vperm.xlu0 %144, %v74
    %v146 = vpop.permute.xlu0 %145
    %149 = vset.pattern.permute.xlu0 0
    %150 = vperm.xlu0 %149, %v75
    %v151 = vpop.permute.xlu0 %150
    %v154 = vperm.slane %v56, 0
    %v156 = vmul.f32 %v136, %v154
    %v157 = vmul.f32 %v141, %v154
    %v158 = vmul.f32 %v146, %v154
    %v159 = vmul.f32 %v151, %v154
    %v160 = vadd.f32 %v129, %v156
    %v161 = vadd.f32 %v130, %v157
    %v162 = vadd.f32 %v131, %v158
    %v163 = vadd.f32 %v132, %v159
    %165 = vset.pattern.permute.xlu0 0
    %166 = vperm.xlu0 %165, %v76
    %v167 = vpop.permute.xlu0 %166
    %170 = vset.pattern.permute.xlu0 0
    %171 = vperm.xlu0 %170, %v77
    %v172 = vpop.permute.xlu0 %171
    %175 = vset.pattern.permute.xlu0 0
    %176 = vperm.xlu0 %175, %v78
    %v177 = vpop.permute.xlu0 %176
    %180 = vset.pattern.permute.xlu0 0
    %181 = vperm.xlu0 %180, %v79
    %v182 = vpop.permute.xlu0 %181
    %v184 = vadd.f32 %v160, %v167
    %v185 = vadd.f32 %v161, %v172
    %v186 = vadd.f32 %v162, %v177
    %v187 = vadd.f32 %v163, %v182
    %189 = vset.pattern.permute.xlu0 0
    %190 = vperm.xlu0 %189, %v81
    %v191 = vpop.permute.xlu0 %190
    %v193 = vperm.slane %v191, 0
    %v194 = vmul.f32 %v193, %v55
    %196 = vset.pattern.permute.xlu0 0
    %197 = vperm.xlu0 %196, %v83
    %v198 = vpop.permute.xlu0 %197
    %v200 = vperm.slane %v198, 0
    %v201 = vadd.f32 %v194, %v200
    %v203 = vsel %vm84, %v54, 0
    %205 = vmatpush.msra.mxu0 0.0
    %206 = vmatpush.msra.mxu0 0.0
    %207 = vmatpush.msra.mxu0 0.0
    %208 = vmatpush.msra.mxu0 0.0
    %209 = vmatpush.msra.mxu0 0.0
    %210 = vmatpush.msra.mxu0 0.0
    %211 = vmatpush.msra.mxu0 0.0
    %212 = vmatpush.msra.mxu0 0.0
    %213 = vmatpush.msra.mxu0 0.0
    %214 = vmatpush.msra.mxu0 0.0
    %215 = vmatpush.msra.mxu0 0.0
    %216 = vmatpush.msra.mxu0 0.0
    %217 = vmatpush.msra.mxu0 0.0
    %218 = vmatpush.msra.mxu0 0.0
    %219 = vmatpush.msra.mxu0 0.0
    %220 = vmatpush.msra.mxu0 %v59
    %221 = vmatmul.f32.gmra.mxu0 %v203
    %v222 = vpop.f32.mrf.mxu0
    %v223 = vadd.f32 0.0, %v222
    %224 = vdwg.mxu0
    %226 = vset.pattern.permute.xlu0 0
    %227 = vperm.xlu0 %226, %v64
    %v228 = vpop.permute.xlu0 %227
    %231 = vset.pattern.permute.xlu0 0
    %232 = vperm.xlu0 %231, %v65
    %v233 = vpop.permute.xlu0 %232
    %236 = vset.pattern.permute.xlu0 0
    %237 = vperm.xlu0 %236, %v66
    %v238 = vpop.permute.xlu0 %237
    %241 = vset.pattern.permute.xlu0 0
    %242 = vperm.xlu0 %241, %v67
    %v243 = vpop.permute.xlu0 %242
    %v245 = vperm.slane %v223, 0
    %v246 = vmul.f32 %v228, %v245
    %v247 = vmul.f32 %v233, %v245
    %v248 = vmul.f32 %v238, %v245
    %v249 = vmul.f32 %v243, %v245
    %v250 = vadd.f32 %v246, %v184
    %v251 = vadd.f32 %v247, %v185
    %v252 = vadd.f32 %v248, %v186
    %v253 = vadd.f32 %v249, %v187
    %v254 = vmax.f32 %v250, 0.0
    %v255 = vmax.f32 %v251, 0.0
    %v256 = vmax.f32 %v252, 0.0
    %v257 = vmax.f32 %v253, 0.0
    %vm258 = vcmask 261120
    %v260 = vsel %vm258, %v82, 0
    %262 = vmatpush.msra.mxu0 0.0
    %263 = vmatpush.msra.mxu0 0.0
    %264 = vmatpush.msra.mxu0 0.0
    %265 = vmatpush.msra.mxu0 0.0
    %266 = vmatpush.msra.mxu0 0.0
    %267 = vmatpush.msra.mxu0 0.0
    %268 = vmatpush.msra.mxu0 0.0
    %269 = vmatpush.msra.mxu0 0.0
    %270 = vmatpush.msra.mxu0 0.0
    %271 = vmatpush.msra.mxu0 0.0
    %272 = vmatpush.msra.mxu0 0.0
    %273 = vmatpush.msra.mxu0 0.0
    %274 = vmatpush.msra.mxu0 %v257
    %275 = vmatpush.msra.mxu0 %v256
    %276 = vmatpush.msra.mxu0 %v255
    %277 = vmatpush.msra.mxu0 %v254
    %278 = vmatmul.f32.gmra.mxu0 %v260
    %v279 = vpop.f32.mrf.mxu0
    %v280 = vadd.f32 0.0, %v279
    %281 = vdwg.mxu0
    %vm282 = vcmask 130048
    %v284 = vsel %vm282, %v280, 0
    %286 = vmatpush.msra.mxu0 0.0
    %287 = vmatpush.msra.mxu0 0.0
    %288 = vmatpush.msra.mxu0 0.0
    %289 = vmatpush.msra.mxu0 0.0
    %290 = vmatpush.msra.mxu0 0.0
    %291 = vmatpush.msra.mxu0 0.0
    %292 = vmatpush.msra.mxu0 0.0
    %293 = vmatpush.msra.mxu0 0.0
    %294 = vmatpush.msra.mxu0 0.0
    %295 = vmatpush.msra.mxu0 0.0
    %296 = vmatpush.msra.mxu0 0.0
    %297 = vmatpush.msra.mxu0 0.0
    %298 = vmatpush.msra.mxu0 0.0
    %299 = vmatpush.msra.mxu0 0.0
    %300 = vmatpush.msra.mxu0 %v63
    %301 = vmatpush.msra.mxu0 %v62
    %302 = vmatmul.f32.gmra.mxu0 %v284
    %v303 = vpop.f32.mrf.mxu0
    %v304 = vadd.f32 0.0, %v303
    %305 = vdwg.mxu0
    %v306 = vmul.f32 %v304, %v57
    %308 = vset.pattern.permute.xlu0 0
    %309 = vperm.xlu0 %308, %v80
    %v310 = vpop.permute.xlu0 %309
    %v312 = vperm.slane %v310, 0
    %v313 = vmul.f32 %v312, %v54
    %v314 = vadd.f32 %v313, %v306
    %v315 = vadd.f32 %v314, %v201
    %v316 = vxor.u32 %v315, 2147483648
    %v317 = vmul.f32 %v316, 1.442695
    %v318 = vpow.pop %v317
    %v319 = vadd.f32 %v318, 1.0
    %v320 = vrcp.pop %v319
    %v321 = vmul.f32 %v319, %v320
    %v322 = vsub.f32 1.0, %v321
    %v323 = vmul.f32 %v320, %v322
    %v324 = vadd.f32 %v320, %v323
    %vm325 = vweird.f32 %v319
    %vm326 = vweird.f32 %v320
    %vm327 = vmor %vm325, %vm326
    %v328 = vsel %vm327, %v320, %v324
    %v329 = vand.u32 2147483647, %v319
    %vm330 = vcmp.eq.f32.partialorder %v329, 8.507059e+37
    %v331 = vand.u32 %v319, 2147483648
    %v332 = vor.u32 1.1754944e-38, %v331
    %v333 = vsel %vm330, %v332, %v328
    %v334 = vmul.f32 1.0, %v333
    %v336 = vsel %vm84, %v334, 0
    %338 = vmatpush.msra.mxu0 0.0
    %339 = vmatpush.msra.mxu0 0.0
    %340 = vmatpush.msra.mxu0 0.0
    %341 = vmatpush.msra.mxu0 0.0
    %342 = vmatpush.msra.mxu0 0.0
    %343 = vmatpush.msra.mxu0 0.0
    %344 = vmatpush.msra.mxu0 0.0
    %345 = vmatpush.msra.mxu0 0.0
    %346 = vmatpush.msra.mxu0 0.0
    %347 = vmatpush.msra.mxu0 0.0
    %348 = vmatpush.msra.mxu0 0.0
    %349 = vmatpush.msra.mxu0 0.0
    %350 = vmatpush.msra.mxu0 0.0
    %351 = vmatpush.msra.mxu0 0.0
    %352 = vmatpush.msra.mxu0 0.0
    %353 = vmatpush.msra.mxu0 %v59
    %354 = vmatmul.f32.gmra.mxu0 %v336
    %v355 = vpop.f32.mrf.mxu0
    %v356 = vadd.f32 0.0, %v355
    %357 = vdwg.mxu0
    %v358 = vperm.slane %v356, 0
    %v359 = vmul.f32 %v228, %v358
    %v360 = vmul.f32 %v233, %v358
    %v361 = vmul.f32 %v238, %v358
    %v362 = vmul.f32 %v243, %v358
    %v363 = vadd.f32 %v359, %v184
    %v364 = vadd.f32 %v360, %v185
    %v365 = vadd.f32 %v361, %v186
    %v366 = vadd.f32 %v362, %v187
    %v367 = vmax.f32 %v363, 0.0
    %v368 = vmax.f32 %v364, 0.0
    %v369 = vmax.f32 %v365, 0.0
    %v370 = vmax.f32 %v366, 0.0
    %371 = vmatpush.msra.mxu0 0.0
    %372 = vmatpush.msra.mxu0 0.0
    %373 = vmatpush.msra.mxu0 0.0
    %374 = vmatpush.msra.mxu0 0.0
    %375 = vmatpush.msra.mxu0 0.0
    %376 = vmatpush.msra.mxu0 0.0
    %377 = vmatpush.msra.mxu0 0.0
    %378 = vmatpush.msra.mxu0 0.0
    %379 = vmatpush.msra.mxu0 0.0
    %380 = vmatpush.msra.mxu0 0.0
    %381 = vmatpush.msra.mxu0 0.0
    %382 = vmatpush.msra.mxu0 0.0
    %383 = vmatpush.msra.mxu0 %v370
    %384 = vmatpush.msra.mxu0 %v369
    %385 = vmatpush.msra.mxu0 %v368
    %386 = vmatpush.msra.mxu0 %v367
    %387 = vmatmul.f32.gmra.mxu0 %v260
    %v388 = vpop.f32.mrf.mxu0
    %v389 = vadd.f32 0.0, %v388
    %390 = vdwg.mxu0
    %v392 = vsel %vm282, %v389, 0
    %394 = vmatpush.msra.mxu0 0.0
    %395 = vmatpush.msra.mxu0 0.0
    %396 = vmatpush.msra.mxu0 0.0
    %397 = vmatpush.msra.mxu0 0.0
    %398 = vmatpush.msra.mxu0 0.0
    %399 = vmatpush.msra.mxu0 0.0
    %400 = vmatpush.msra.mxu0 0.0
    %401 = vmatpush.msra.mxu0 0.0
    %402 = vmatpush.msra.mxu0 0.0
    %403 = vmatpush.msra.mxu0 0.0
    %404 = vmatpush.msra.mxu0 0.0
    %405 = vmatpush.msra.mxu0 0.0
    %406 = vmatpush.msra.mxu0 0.0
    %407 = vmatpush.msra.mxu0 0.0
    %408 = vmatpush.msra.mxu0 %v63
    %409 = vmatpush.msra.mxu0 %v62
    %410 = vmatmul.f32.gmra.mxu0 %v392
    %v411 = vpop.f32.mrf.mxu0
    %v412 = vadd.f32 0.0, %v411
    %413 = vdwg.mxu0
    %v414 = vmul.f32 %v412, %v57
    %v415 = vmul.f32 %v312, %v334
    %v416 = vadd.f32 %v415, %v414
    %v417 = vadd.f32 %v416, %v201
    %v418 = vxor.u32 %v417, 2147483648
    %v419 = vmul.f32 %v418, 1.442695
    %v420 = vpow.pop %v419
    %v421 = vadd.f32 %v420, 1.0
    %v422 = vrcp.pop %v421
    %v423 = vmul.f32 %v421, %v422
    %v424 = vsub.f32 1.0, %v423
    %v425 = vmul.f32 %v422, %v424
    %v426 = vadd.f32 %v422, %v425
    %vm427 = vweird.f32 %v421
    %vm428 = vweird.f32 %v422
    %vm429 = vmor %vm427, %vm428
    %v430 = vsel %vm429, %v422, %v426
    %v431 = vand.u32 2147483647, %v421
    %vm432 = vcmp.eq.f32.partialorder %v431, 8.507059e+37
    %v433 = vand.u32 %v421, 2147483648
    %v434 = vor.u32 1.1754944e-38, %v433
    %v435 = vsel %vm432, %v434, %v430
    %v436 = vmul.f32 1.0, %v435
    %v438 = vsel %vm84, %v436, 0
    %440 = vmatpush.msra.mxu0 0.0
    %441 = vmatpush.msra.mxu0 0.0
    %442 = vmatpush.msra.mxu0 0.0
    %443 = vmatpush.msra.mxu0 0.0
    %444 = vmatpush.msra.mxu0 0.0
    %445 = vmatpush.msra.mxu0 0.0
    %446 = vmatpush.msra.mxu0 0.0
    %447 = vmatpush.msra.mxu0 0.0
    %448 = vmatpush.msra.mxu0 0.0
    %449 = vmatpush.msra.mxu0 0.0
    %450 = vmatpush.msra.mxu0 0.0
    %451 = vmatpush.msra.mxu0 0.0
    %452 = vmatpush.msra.mxu0 0.0
    %453 = vmatpush.msra.mxu0 0.0
    %454 = vmatpush.msra.mxu0 0.0
    %455 = vmatpush.msra.mxu0 %v59
    %456 = vmatmul.f32.gmra.mxu0 %v438
    %v457 = vpop.f32.mrf.mxu0
    %v458 = vadd.f32 0.0, %v457
    %459 = vdwg.mxu0
    %v460 = vperm.slane %v458, 0
    %v461 = vmul.f32 %v228, %v460
    %v462 = vmul.f32 %v233, %v460
    %v463 = vmul.f32 %v238, %v460
    %v464 = vmul.f32 %v243, %v460
    %v465 = vadd.f32 %v461, %v184
    %v466 = vadd.f32 %v462, %v185
    %v467 = vadd.f32 %v463, %v186
    %v468 = vadd.f32 %v464, %v187
    %v469 = vmax.f32 %v465, 0.0
    %v470 = vmax.f32 %v466, 0.0
    %v471 = vmax.f32 %v467, 0.0
    %v472 = vmax.f32 %v468, 0.0
    %473 = vmatpush.msra.mxu0 0.0
    %474 = vmatpush.msra.mxu0 0.0
    %475 = vmatpush.msra.mxu0 0.0
    %476 = vmatpush.msra.mxu0 0.0
    %477 = vmatpush.msra.mxu0 0.0
    %478 = vmatpush.msra.mxu0 0.0
    %479 = vmatpush.msra.mxu0 0.0
    %480 = vmatpush.msra.mxu0 0.0
    %481 = vmatpush.msra.mxu0 0.0
    %482 = vmatpush.msra.mxu0 0.0
    %483 = vmatpush.msra.mxu0 0.0
    %484 = vmatpush.msra.mxu0 0.0
    %485 = vmatpush.msra.mxu0 %v472
    %486 = vmatpush.msra.mxu0 %v471
    %487 = vmatpush.msra.mxu0 %v470
    %488 = vmatpush.msra.mxu0 %v469
    %489 = vmatmul.f32.gmra.mxu0 %v260
    %v490 = vpop.f32.mrf.mxu0
    %v491 = vadd.f32 0.0, %v490
    %492 = vdwg.mxu0
    %v494 = vsel %vm282, %v491, 0
    %496 = vmatpush.msra.mxu0 0.0
    %497 = vmatpush.msra.mxu0 0.0
    %498 = vmatpush.msra.mxu0 0.0
    %499 = vmatpush.msra.mxu0 0.0
    %500 = vmatpush.msra.mxu0 0.0
    %501 = vmatpush.msra.mxu0 0.0
    %502 = vmatpush.msra.mxu0 0.0
    %503 = vmatpush.msra.mxu0 0.0
    %504 = vmatpush.msra.mxu0 0.0
    %505 = vmatpush.msra.mxu0 0.0
    %506 = vmatpush.msra.mxu0 0.0
    %507 = vmatpush.msra.mxu0 0.0
    %508 = vmatpush.msra.mxu0 0.0
    %509 = vmatpush.msra.mxu0 0.0
    %510 = vmatpush.msra.mxu0 %v63
    %511 = vmatpush.msra.mxu0 %v62
    %512 = vmatmul.f32.gmra.mxu0 %v494
    %v513 = vpop.f32.mrf.mxu0
    %v514 = vadd.f32 0.0, %v513
    %515 = vdwg.mxu0
    %v516 = vmul.f32 %v514, %v57
    %v517 = vmul.f32 %v312, %v436
    %v518 = vadd.f32 %v517, %v516
    %v519 = vadd.f32 %v518, %v201
    %v520 = vxor.u32 %v519, 2147483648
    %v521 = vmul.f32 %v520, 1.442695
    %v522 = vpow.pop %v521
    %v523 = vadd.f32 %v522, 1.0
    %v524 = vrcp.pop %v523
    %v525 = vmul.f32 %v523, %v524
    %v526 = vsub.f32 1.0, %v525
    %v527 = vmul.f32 %v524, %v526
    %v528 = vadd.f32 %v524, %v527
    %vm529 = vweird.f32 %v523
    %vm530 = vweird.f32 %v524
    %vm531 = vmor %vm529, %vm530
    %v532 = vsel %vm531, %v524, %v528
    %v533 = vand.u32 2147483647, %v523
    %vm534 = vcmp.eq.f32.partialorder %v533, 8.507059e+37
    %v535 = vand.u32 %v523, 2147483648
    %v536 = vor.u32 1.1754944e-38, %v535
    %v537 = vsel %vm534, %v536, %v532
    %v538 = vmul.f32 1.0, %v537
    %vm539 = vcmask 57344
    %540 = vst.msk [vmem:[#allocation5] sm:$0x1] %vm539, %v538
    %541 = vst.msk [vmem:[#allocation5 + $0x1] sm:$0x1] %vm539, %v55
    // Predicated region
    $region58: #{tpu_custom_call.1} parent=1 // pred_check
      _
    $region59: #{tpu_custom_call.1} parent=1 // pred_check_branch
      %543 = sbr.rel (0) target = $region61
    $region60: #{tpu_custom_call.1} parent=1 // pred_region
      %545 = vsyncadd [#allocation6], 0
      %s547 = sshll.u32 [#allocation5], 4
      %s548 = int_to_ptr.vmem [resolvable:$true] %s547
      %s549 = sshll.u32 %s14, 4
      %s550 = int_to_ptr.hbm [resolvable:$true] %s549
      %552 = dma.vmem_to_hbm [thread:$0]  %s548, 32, %s550, [#allocation6]
    $region61: #{tpu_custom_call.1} parent=1 // pred_fallthru
      _
    // Predicated region
    $region62: #{tpu_custom_call.1} parent=1 // pred_check
      _
    $region63: #{tpu_custom_call.1} parent=1 // pred_check_branch
      %554 = sbr.rel (0) target = $region65
    $region64: #{tpu_custom_call.1} parent=1 // pred_region
      %556 = dma.done [#allocation6], 32
    $region65: #{tpu_custom_call.1} parent=1 // pred_fallthru
      _
    %557 = vsyncpa [#allocation6], 1

</llo_original>
